<compile_context>
chip_gen: v7x
topology: tpu7x:2x2x1
jax: 0.10.0
libtpu: 0.0.40
codegen_flags: <defaults>
</compile_context>

<pallas_src>
import functools

import jax
import jax.numpy as jnp
import numpy as np
from jax.experimental import pallas as pl
from jax.experimental.pallas import tpu as pltpu


# ----------------------------- small helpers ------------------------------ #

def _pair(v):
    return (v, v) if isinstance(v, int) else tuple(v)


def _quadruple(v):
    return (v, v, v, v) if isinstance(v, int) else tuple(v)


def _cdiv(a, b):
    return -(-a // b)


def _compute_padding(shape, kh, kw, sh, sw, padding, same):
    """Replicates MedianPool2d._padding -> (left, right, top, bottom)."""
    H, W = shape[2], shape[3]
    if same:
        ph = max(kh - sh, 0) if H % sh == 0 else max(kh - H % sh, 0)
        pw = max(kw - sw, 0) if W % sw == 0 else max(kw - W % sw, 0)
        left, right = pw // 2, pw - pw // 2
        top, bottom = ph // 2, ph - ph // 2
    else:
        left, right, top, bottom = _quadruple(padding)
    return left, right, top, bottom


# ------------------------- median selection network ------------------------ #

# Minimal 19-compare-exchange median-of-9 network (Devillard / Paeth).
_MED9_PAIRS = (
    (1, 2), (4, 5), (7, 8), (0, 1), (3, 4), (6, 7), (1, 2), (4, 5), (7, 8),
    (0, 3), (5, 8), (4, 7), (3, 6), (1, 4), (2, 5), (4, 7), (4, 2), (6, 4),
    (4, 2),
)


def _med9_selftest():
    """Cheap numpy validation of the 19-CE network; fall back to the generic
    selection network if it ever disagrees with a full sort."""
    rng = np.random.RandomState(0)
    x = rng.randn(512, 9).astype(np.float32)
    p = [x[:, i] for i in range(9)]
    for i, j in _MED9_PAIRS:
        lo = np.minimum(p[i], p[j])
        hi = np.maximum(p[i], p[j])
        p[i], p[j] = lo, hi
    return bool(np.all(p[4] == np.sort(x, axis=1)[:, 4]))


_USE_MED9 = _med9_selftest()


def _num_compare_exchanges(m, rank):
    if m == 9 and rank == 4 and _USE_MED9:
        return len(_MED9_PAIRS)
    return (rank + 1) * (m - 1) - rank * (rank + 1) // 2


def _median_select(wins, rank):
    """Elementwise rank-selection over the kh*kw window slices (pure VPU
    min/max; NaNs propagate like torch.median)."""
    def cas(a, b):
        return jnp.minimum(a, b), jnp.maximum(a, b)

    m = len(wins)
    w = list(wins)
    if m == 9 and rank == 4 and _USE_MED9:
        for i, j in _MED9_PAIRS:
            w[i], w[j] = cas(w[i], w[j])
        return w[4]
    # Generic partial selection network: after outer step i, w[i] holds the
    # i-th smallest value per output pixel; only steps 0..rank are needed.
    for i in range(rank + 1):
        for j in range(i + 1, m):
            w[i], w[j] = cas(w[i], w[j])
    return w[rank]


# ------------------------------ Pallas kernel ------------------------------ #

def _median_kernel(x_ref, o_ref, *, kh, kw, sh, sw, Ho, Wo, planes_last, pads):
    left, right, top, bottom = pads
    xv = x_ref[...]  # hoist: single load of the whole resident block

    if planes_last and (top or bottom or left or right):
        # In-kernel 'reflect' padding.  In this layout H is the outer axis and
        # W the sublane axis, so the mirror border is built from static slices
        # without ever moving data across lanes (no extra HBM round trip).
        H = xv.shape[0]
        if top or bottom:
            rows = ([xv[i:i + 1] for i in range(top, 0, -1)]
                    + [xv]
                    + [xv[H - 2 - i:H - 1 - i] for i in range(bottom)])
            xv = jnp.concatenate(rows, axis=0)
        W = xv.shape[1]
        if left or right:
            cols = ([xv[:, j:j + 1] for j in range(left, 0, -1)]
                    + [xv]
                    + [xv[:, W - 2 - j:W - 1 - j] for j in range(right)])
            xv = jnp.concatenate(cols, axis=1)

    # kh*kw shifted (and, for stride > 1, strided) window slices.  All offsets
    # and strides are static Python ints -> static slices.
    wins = []
    for di in range(kh):
        hs = slice(di, di + sh * (Ho - 1) + 1, sh)
        for dj in range(kw):
            ws = slice(dj, dj + sw * (Wo - 1) + 1, sw)
            if planes_last:
                wins.append(xv[hs, ws, :])   # shifts only touch outer/sublane axes
            else:
                wins.append(xv[:, hs, ws])

    med = _median_select(wins, (kh * kw - 1) // 2)
    o_ref[...] = med.astype(o_ref.dtype)


# ------------------------------ public wrapper ----------------------------- #

_VMEM_STEP_BUDGET = 12 * 1024 * 1024   # per-grid-step working-set target (bytes)
_VMEM_LIMIT = 32 * 1024 * 1024         # scoped VMEM limit (safe on v5e/v6e/v7x)


def _pick_plane_block(P, per_plane_bytes, lane_tiled):
    """Largest plane batch per grid step that fits the VMEM budget, preferring
    a grid of length >= 2 so v7x can shard it across its 2 TensorCores."""
    fit = max(1, _VMEM_STEP_BUDGET // max(per_plane_bytes, 1))
    if lane_tiled:
        # Planes sit on the 128-lane axis: a block must either equal the full
        # plane axis or be a multiple of 128 (Mosaic (8, 128) tile rule).
        if P <= 128:
            return P                      # single (possibly partial) lane tile
        n_tiles = _cdiv(P, 128)
        tiles_fit = max(1, fit // 128)
        tiles_cap = max(1, n_tiles // 2)  # keep >= 2 grid steps for v7x
        return 128 * min(tiles_fit, tiles_cap)
    pb = min(P, fit)
    if P >= 2:
        pb = min(pb, _cdiv(P, 2))         # keep >= 2 grid steps for v7x
    return max(1, pb)


def median_pool2d(x, kernel_size=3, stride=1, padding=0, same=False):
    """MedianPool2d.forward for NCHW input; the median runs in a Pallas kernel."""
    kh, kw = _pair(kernel_size)
    sh, sw = _pair(stride)
    N, C, H, W = x.shape
    left, right, top, bottom = _compute_padding(x.shape, kh, kw, sh, sw, padding, same)
    if not (top < H and bottom < H and left < W and right < W):
        raise ValueError("reflect padding must be smaller than the spatial dims")

    Hp, Wp = H + top + bottom, W + left + right
    Ho = (Hp - kh) // sh + 1
    Wo = (Wp - kw) // sw + 1
    P = N * C
    m = kh * kw
    rank = (m - 1) // 2
    itemsize = x.dtype.itemsize
    has_pad = bool(left or right or top or bottom)

    # Layout selection: put whichever axis is lane-denser on the 128-lane axis.
    planes_last = (P >= 128) or (P >= Wp)

    kernel = functools.partial(
        _median_kernel, kh=kh, kw=kw, sh=sh, sw=sw, Ho=Ho, Wo=Wo,
        planes_last=planes_last,
        pads=(left, right, top, bottom) if planes_last else (0, 0, 0, 0),
    )

    # Conservative per-plane VMEM footprint: double-buffered in/out blocks plus
    # the in-kernel padded copy and the live window temporaries of the network.
    per_plane_bytes = itemsize * (3 * Hp * Wp + (m + 4) * Ho * Wo)
    pb = _pick_plane_block(P, per_plane_bytes, lane_tiled=planes_last)
    grid = (_cdiv(P, pb),)

    n_ce = _num_compare_exchanges(m, rank)
    cost = pl.CostEstimate(
        flops=int(2 * n_ce * P * Ho * Wo),          # one min + one max per CE
        transcendentals=0,
        bytes_accessed=int(P * (Hp * Wp + Ho * Wo) * itemsize),
    )
    cparams = pltpu.CompilerParams(
        dimension_semantics=("parallel",),          # shard plane blocks over TCs
        vmem_limit_bytes=_VMEM_LIMIT,
    )

    if planes_last:
        # (H, W, P) with planes on lanes; reflect padding happens in-kernel.
        xp = x.reshape(P, H, W).transpose(1, 2, 0)
        out = pl.pallas_call(
            kernel,
            out_shape=jax.ShapeDtypeStruct((Ho, Wo, P), x.dtype),
            grid_spec=pltpu.PrefetchScalarGridSpec(
                num_scalar_prefetch=0,
                grid=grid,
                in_specs=[pl.BlockSpec((H, W, pb), lambda p: (0, 0, p))],
                out_specs=pl.BlockSpec((Ho, Wo, pb), lambda p: (0, 0, p)),
            ),
            compiler_params=cparams,
            cost_estimate=cost,
        )(xp)
        return out.transpose(2, 0, 1).reshape(N, C, Ho, Wo)

    # Planes-first layout: W stays on lanes; reflect padding in the wrapper.
    xp = x.reshape(P, H, W)
    if has_pad:
        # TODO(synk): fold reflect padding into the kernel for this layout too
        # (needs lane-axis mirror slices); the default padding=0 / same=False
        # config never takes this branch.
        xp = jnp.pad(xp, ((0, 0), (top, bottom), (left, right)), mode="reflect")
    out = pl.pallas_call(
        kernel,
        out_shape=jax.ShapeDtypeStruct((P, Ho, Wo), x.dtype),
        grid_spec=pltpu.PrefetchScalarGridSpec(
            num_scalar_prefetch=0,
            grid=grid,
            in_specs=[pl.BlockSpec((pb, Hp, Wp), lambda p: (p, 0, 0))],
            out_specs=pl.BlockSpec((pb, Ho, Wo), lambda p: (p, 0, 0)),
        ),
        compiler_params=cparams,
        cost_estimate=cost,
    )(xp)
    return out.reshape(N, C, Ho, Wo)


# ----------------------------- pure-JAX reference -------------------------- #

def _reference_median_pool2d(x, kernel_size=3, stride=1, padding=0, same=False):
    """Mirrors the torch module: reflect pad -> unfold -> median (lower middle)."""
    kh, kw = _pair(kernel_size)
    sh, sw = _pair(stride)
    left, right, top, bottom = _compute_padding(x.shape, kh, kw, sh, sw, padding, same)
    if left or right or top or bottom:
        xp = jnp.pad(x, ((0, 0), (0, 0), (top, bottom), (left, right)), mode="reflect")
    else:
        xp = x
    Hp, Wp = x.shape[2] + top + bottom, x.shape[3] + left + right
    Ho = (Hp - kh) // sh + 1
    Wo = (Wp - kw) // sw + 1
    wins = []
    for di in range(kh):
        for dj in range(kw):
            wins.append(xp[:, :,
                           di:di + sh * (Ho - 1) + 1:sh,
                           dj:dj + sw * (Wo - 1) + 1:sw])
    stack = jnp.stack(wins, axis=-1)
    return jnp.sort(stack, axis=-1)[..., (kh * kw - 1) // 2]


# ----------------------------------- demo ---------------------------------- #

if __name__ == "__main__":
    def check(x, **kw):
        y = jax.block_until_ready(median_pool2d(x, **kw))
        y_ref = jax.block_until_ready(_reference_median_pool2d(x, **kw))
        assert y.shape == y_ref.shape, (y.shape, y_ref.shape)
        # The median selects an existing element, so results are bit-exact.
        np.testing.assert_array_equal(np.asarray(y), np.asarray(y_ref))
        return y

    key = jax.random.PRNGKey(0)
    x = jax.random.normal(key, (2, 4, 16, 16), dtype=jnp.float32)

    # Config 1: module defaults — MedianPool2d(kernel_size=3, stride=1, padding=0)
    y = check(x, kernel_size=3, stride=1, padding=0, same=False)
    assert y.shape == (2, 4, 14, 14)

    # Config 2: 'same' reflect padding; output shape == input shape.
    y2 = check(x, kernel_size=3, stride=1, same=True)
    assert y2.shape == (2, 4, 16, 16)

    # Config 3: many channels -> planes-on-lanes layout + in-kernel reflect pad.
    x3 = jax.random.normal(jax.random.PRNGKey(1), (2, 64, 16, 16), dtype=jnp.float32)
    check(x3, kernel_size=3, stride=1, same=True)

    # Config 4: 5x5 kernel exercises the generic partial selection network.
    x4 = jax.random.normal(jax.random.PRNGKey(2), (1, 2, 16, 16), dtype=jnp.float32)
    check(x4, kernel_size=5, stride=1, same=True)

    # Config 5: bf16 end-to-end (min/max network runs in bf16).
    check(x.astype(jnp.bfloat16), kernel_size=3, stride=1, padding=0, same=False)

    print("KERNEL_OK")
</pallas_src>

<mosaic_0001>
module attributes {stable_mosaic.version = 11 : i64} {
  func.func @_median_kernel(%arg0: i32, %arg1: memref<4x16x16xf32, #tpu.memory_space<vmem>>, %arg2: memref<4x14x14xf32, #tpu.memory_space<vmem>>) attributes {dimension_semantics = [#tpu.dimension_semantics<parallel>], iteration_bounds = array<i64: 2>, scalar_prefetch = 0 : i64, scratch_operands = 0 : i64, tpu.core_type = #tpu.core_type<tc>, window_params = [{transform_indices = @transform_0, window_bounds = array<i64: 4, 16, 16>}, {transform_indices = @transform_1, window_bounds = array<i64: 4, 14, 14>}]} {
    %c0 = arith.constant 0 : index
    %c0_0 = arith.constant 0 : index
    %c0_1 = arith.constant 0 : index
    %0 = vector.load %arg1[%c0, %c0_0, %c0_1] : memref<4x16x16xf32, #tpu.memory_space<vmem>>, vector<4x16x16xf32>
    %1 = vector.extract_strided_slice %0 {offsets = [0, 0, 0], sizes = [4, 14, 14], strides = [1, 1, 1]} : vector<4x16x16xf32> to vector<4x14x14xf32>
    %2 = vector.extract_strided_slice %0 {offsets = [0, 0, 1], sizes = [4, 14, 14], strides = [1, 1, 1]} : vector<4x16x16xf32> to vector<4x14x14xf32>
    %3 = vector.extract_strided_slice %0 {offsets = [0, 0, 2], sizes = [4, 14, 14], strides = [1, 1, 1]} : vector<4x16x16xf32> to vector<4x14x14xf32>
    %4 = vector.extract_strided_slice %0 {offsets = [0, 1, 0], sizes = [4, 14, 14], strides = [1, 1, 1]} : vector<4x16x16xf32> to vector<4x14x14xf32>
    %5 = vector.extract_strided_slice %0 {offsets = [0, 1, 1], sizes = [4, 14, 14], strides = [1, 1, 1]} : vector<4x16x16xf32> to vector<4x14x14xf32>
    %6 = vector.extract_strided_slice %0 {offsets = [0, 1, 2], sizes = [4, 14, 14], strides = [1, 1, 1]} : vector<4x16x16xf32> to vector<4x14x14xf32>
    %7 = vector.extract_strided_slice %0 {offsets = [0, 2, 0], sizes = [4, 14, 14], strides = [1, 1, 1]} : vector<4x16x16xf32> to vector<4x14x14xf32>
    %8 = vector.extract_strided_slice %0 {offsets = [0, 2, 1], sizes = [4, 14, 14], strides = [1, 1, 1]} : vector<4x16x16xf32> to vector<4x14x14xf32>
    %9 = vector.extract_strided_slice %0 {offsets = [0, 2, 2], sizes = [4, 14, 14], strides = [1, 1, 1]} : vector<4x16x16xf32> to vector<4x14x14xf32>
    %10 = arith.minimumf %2, %3 : vector<4x14x14xf32>
    %11 = arith.maximumf %2, %3 : vector<4x14x14xf32>
    %12 = arith.minimumf %5, %6 : vector<4x14x14xf32>
    %13 = arith.maximumf %5, %6 : vector<4x14x14xf32>
    %14 = arith.minimumf %8, %9 : vector<4x14x14xf32>
    %15 = arith.maximumf %8, %9 : vector<4x14x14xf32>
    %16 = arith.minimumf %1, %10 : vector<4x14x14xf32>
    %17 = arith.maximumf %1, %10 : vector<4x14x14xf32>
    %18 = arith.minimumf %4, %12 : vector<4x14x14xf32>
    %19 = arith.maximumf %4, %12 : vector<4x14x14xf32>
    %20 = arith.minimumf %7, %14 : vector<4x14x14xf32>
    %21 = arith.maximumf %7, %14 : vector<4x14x14xf32>
    %22 = arith.minimumf %17, %11 : vector<4x14x14xf32>
    %23 = arith.maximumf %17, %11 : vector<4x14x14xf32>
    %24 = arith.minimumf %19, %13 : vector<4x14x14xf32>
    %25 = arith.maximumf %19, %13 : vector<4x14x14xf32>
    %26 = arith.minimumf %21, %15 : vector<4x14x14xf32>
    %27 = arith.maximumf %21, %15 : vector<4x14x14xf32>
    %28 = arith.maximumf %16, %18 : vector<4x14x14xf32>
    %29 = arith.minimumf %25, %27 : vector<4x14x14xf32>
    %30 = arith.minimumf %24, %26 : vector<4x14x14xf32>
    %31 = arith.maximumf %24, %26 : vector<4x14x14xf32>
    %32 = arith.maximumf %28, %20 : vector<4x14x14xf32>
    %33 = arith.maximumf %22, %30 : vector<4x14x14xf32>
    %34 = arith.minimumf %23, %29 : vector<4x14x14xf32>
    %35 = arith.minimumf %33, %31 : vector<4x14x14xf32>
    %36 = arith.minimumf %35, %34 : vector<4x14x14xf32>
    %37 = arith.maximumf %35, %34 : vector<4x14x14xf32>
    %38 = arith.maximumf %32, %36 : vector<4x14x14xf32>
    %39 = arith.minimumf %38, %37 : vector<4x14x14xf32>
    %c0_2 = arith.constant 0 : index
    %c0_3 = arith.constant 0 : index
    %c0_4 = arith.constant 0 : index
    %40 = vector.load %arg2[%c0_2, %c0_3, %c0_4] : memref<4x14x14xf32, #tpu.memory_space<vmem>>, vector<4x14x14xf32>
    tpu.vector_store %arg2[%c0_2, %c0_3, %c0_4], %39 {strides = array<i32>} : memref<4x14x14xf32, #tpu.memory_space<vmem>>, vector<4x14x14xf32>,
    return
  }
  func.func @transform_0(%arg0: i32) -> (i32, i32, i32) {
    %c0_i32 = arith.constant 0 : i32
    %c0_i32_0 = arith.constant 0 : i32
    %c0_i32_1 = arith.constant 0 : i32
    return %arg0, %c0_i32, %c0_i32_0 : i32, i32, i32
  }
  func.func @transform_1(%arg0: i32) -> (i32, i32, i32) {
    %c0_i32 = arith.constant 0 : i32
    %c0_i32_0 = arith.constant 0 : i32
    %c0_i32_1 = arith.constant 0 : i32
    return %arg0, %c0_i32, %c0_i32_0 : i32, i32, i32
  }
}

</mosaic_0001>

<llo_original>
// kernel: tpu_custom_call.1
$region0: #{tpu_custom_call.1}
  #allocation0 [shape = 'u32[]', space=smem, size = 0x4, offset = 0x4, fixed_abs, tag = 'smem constant byte address 0x4 - core index']
  #allocation1 [shape = 'u32[144,128]{1,0:T(1,128)}', space=vmem, size = 0x12000, scoped, tag = 'internal scratch']
  %s0 = inlined_call_operand.hbm [shape: f32[8,16,16], index: 0, kind: input, shape index: {}]
  %s1 = inlined_call_operand.vmem [shape: f32[8,14,14], index: 1, kind: output, shape index: {}]
  %s2 = sld [smem:[#allocation0]]
  $region41: #{tpu_custom_call.1} parent=0
    _
  %s4 = ssub.s32 1, %s2
  %s5 = scalar_select 0, %s4, %s2
  $region1: #{tpu_custom_call.1} parent=0
    #allocation2 [shape = 'u8[65536]{0}', space=vmem, size = 0x10000, scoped, tag = 'input window, operand 0']
    #allocation3 [shape = 's32[2]{0}', space=sflag, size = 0x8, scoped, tag = 'scoped memory for tpu_custom_call.1']
    %6 = vsyncpa [#allocation3], 0
    %s7 = scalar_lea.sflag [#allocation3], 1
    %8 = vsyncpa %s7, 0
    loop: start=0, step=1, limit=4
    $region2: #{tpu_custom_call.1} parent=1 // loop_pre_header
      _
    $region3: #{tpu_custom_call.1} parent=1 // loop_header
      %s10 = sphi 0, %s14
      %p11 = scmp.ge.s32.totalorder %s10, 4
      %s20 = sphi 0, %s22
      %s23 = sphi 0, %s20
      %s24 = sphi 0, %s23
      %s40 = sphi 0, %s24
      %s46 = sphi 0, %s48
      %s49 = sphi 0, %s46
      %s50 = sphi 0, %s49
      %s66 = sphi 0, %s50
    $region4: #{tpu_custom_call.1} parent=1 // loop_header_branch
      %13 = sbr.rel (%p11) target = $region8
    $region5: #{tpu_custom_call.1} parent=1 // loop_body
      %s15 = ssub.s32 %s10, 1
      %s16 = ssub.s32 %s10, 2
      %s17 = sadd.s32 %s10, 1
      %s18 = ssub.s32 %s10, %s17
      %p19 = scmp.eq.s32.totalorder %s18, 0
      %s21 = sadd.s32 %s20, 1
      %s22 = scalar_select %p19, %s20, %s21
      %p25 = pneg %p19
      %p26 = scmp.eq.s32.totalorder %s10, 1
      %p27 = por %p25, %p26
      %p28 = scmp.ne.s32.totalorder %s20, %s23
      %p29 = scmp.eq.s32.totalorder %s10, 0
      %p30 = por %p28, %p29
      %p31 = scmp.ne.s32.totalorder %s20, %s23
      %p32 = scmp.eq.s32.totalorder %s15, 1
      %p33 = por %p31, %p32
      %p34 = scmp.ne.s32.totalorder %s23, %s24
      %p35 = scmp.eq.s32.totalorder %s15, 0
      %p36 = por %p34, %p35
      %p37 = scmp.ne.s32.totalorder %s23, %s24
      %p38 = scmp.eq.s32.totalorder %s16, 1
      %p39 = por %p37, %p38
      %p41 = scmp.ne.s32.totalorder %s24, %s40
      %p42 = scmp.eq.s32.totalorder %s16, 0
      %p43 = por %p41, %p42
      %s44 = ssub.s32 %s10, %s17
      %p45 = scmp.eq.s32.totalorder %s44, 0
      %s47 = sadd.s32 %s46, 1
      %s48 = scalar_select %p45, %s46, %s47
      %p51 = pneg %p45
      %p52 = scmp.eq.s32.totalorder %s10, 1
      %p53 = por %p51, %p52
      %p54 = scmp.ne.s32.totalorder %s46, %s49
      %p55 = scmp.eq.s32.totalorder %s10, 0
      %p56 = por %p54, %p55
      %p57 = scmp.ne.s32.totalorder %s46, %s49
      %p58 = scmp.eq.s32.totalorder %s15, 1
      %p59 = por %p57, %p58
      %p60 = scmp.ne.s32.totalorder %s49, %s50
      %p61 = scmp.eq.s32.totalorder %s15, 0
      %p62 = por %p60, %p61
      %p63 = scmp.ne.s32.totalorder %s49, %s50
      %p64 = scmp.eq.s32.totalorder %s16, 1
      %p65 = por %p63, %p64
      %p67 = scmp.ne.s32.totalorder %s50, %s66
      %p68 = scmp.eq.s32.totalorder %s16, 0
      %p69 = por %p67, %p68
      %p70 = scmp.le.s32.totalorder 1, %s10
      %p71 = scmp.lt.s32.totalorder %s10, 3
      %p72 = pnand %p70, %p71
      %p73 = pneg %p72
      // Predicated region
      $region9: #{tpu_custom_call.1} parent=5 // pred_check
        _
      $region10: #{tpu_custom_call.1} parent=5 // pred_check_branch
        %75 = sbr.rel (%p72) target = $region12
      $region11: #{tpu_custom_call.1} parent=5 // pred_region
        %s76 = ssub.s32 %s10, 1
      $region12: #{tpu_custom_call.1} parent=5 // pred_fallthru
        _
      %p77 = scmp.lt.s32.totalorder %s10, 2
      // Predicated region
      $region13: #{tpu_custom_call.1} parent=5 // pred_check
        %p78 = pneg %p77
      $region14: #{tpu_custom_call.1} parent=5 // pred_check_branch
        %80 = sbr.rel (%p78) target = $region16
      $region15: #{tpu_custom_call.1} parent=5 // pred_region
        // Predicated region
        $region17: #{tpu_custom_call.1} parent=15 // pred_check
          %p81 = pneg %p30
        $region18: #{tpu_custom_call.1} parent=15 // pred_check_branch
          %83 = sbr.rel (%p81) target = $region20
        $region19: #{tpu_custom_call.1} parent=15 // pred_region
          %s84 = sand.u32 %s20, 1
          %s85 = scalar_lea.sflag [#allocation3], %s84
          %s86 = sand.u32 %s20, 1
          %s87 = smul.addr %s86, 64
          %s88 = scalar_lea.vmem [#allocation2], %s87
          %s89 = smul.u32 4, %s10
          %s91 = ssub.s32 1024, 1024
          %92 = vsyncadd %s85, %s91
          %s93 = smul.addr %s89, 2
          %s94 = smul.addr %s93, 128
          %s95 = scalar_lea.hbm %s0, %s94
          %s96 = sshll.u32 %s88, 4
          %s97 = int_to_ptr.vmem [resolvable:$true] %s96
          %102 = dma.hbm_to_vmem [thread:$0]  %s95, 1024, %s97, %s85, 128, 128, 8
        $region20: #{tpu_custom_call.1} parent=15 // pred_fallthru
          _
      $region16: #{tpu_custom_call.1} parent=5 // pred_fallthru
        _
      %p103 = scmp.le.s32.totalorder 1, %s10
      %p104 = scmp.lt.s32.totalorder %s10, 3
      %p105 = pnand %p103, %p104
      %p106 = pneg %p105
      // Predicated region
      $region21: #{tpu_custom_call.1} parent=5 // pred_check
        _
      $region22: #{tpu_custom_call.1} parent=5 // pred_check_branch
        %108 = sbr.rel (%p105) target = $region24
      $region23: #{tpu_custom_call.1} parent=5 // pred_region
        %s109 = ssub.s32 %s10, 1
        %s110 = sand.u32 %s23, 1
        %s111 = scalar_lea.sflag [#allocation3], %s110
        %s112 = sand.u32 %s23, 1
        %s113 = smul.addr %s112, 64
        %s114 = scalar_lea.vmem [#allocation2], %s113
        // Predicated region
        $region25: #{tpu_custom_call.1} parent=23 // pred_check
          %p115 = pneg %p36
        $region26: #{tpu_custom_call.1} parent=23 // pred_check_branch
          %117 = sbr.rel (%p115) target = $region28
        $region27: #{tpu_custom_call.1} parent=23 // pred_region
          %118 = dma.done %s111, 1024
        $region28: #{tpu_custom_call.1} parent=23 // pred_fallthru
          _
        %s119 = sand.u32 %s23, 1
        %s120 = scalar_lea.sflag [#allocation3], %s119
        %s121 = sand.u32 %s23, 1
        %s122 = smul.addr %s121, 64
        %s123 = scalar_lea.vmem [#allocation2], %s122
        %p124 = pneg %p36
        %p125 = pneg %p33
        %p126 = pneg %p62
        %p127 = pneg %p59
        %s128 = smul.u32 4, %s15
        %p129 = scmp.lt.s32.totalorder %s128, 7
        %s130 = scalar_select %p129, %s128, 7
        %s131 = smul.addr %s130, 2
        %s132 = smul.addr %s131, 8
        %s133 = scalar_lea.vmem %s1, %s132
        %s134 = smul.u32 4, %s15
        %s135 = smul.u32 4, %s15
        %p136 = scmp.lt.s32.totalorder %s135, 7
        %s137 = scalar_select %p136, %s135, 7
        %s138 = smul.addr %s137, 2
        %s139 = smul.addr %s138, 8
        %s140 = scalar_lea.vmem %s1, %s139
        %s141 = smul.u32 4, %s15
        %v142 = vld [vmem:[%s114] sm:$0xff]
        %v143 = vld [vmem:[%s114 + $0x8] sm:$0xff]
        %v144 = vld [vmem:[%s114 + $0x10] sm:$0xff]
        %v145 = vld [vmem:[%s114 + $0x18] sm:$0xff]
        %v146 = vld [vmem:[%s114 + $0x20] sm:$0xff]
        %v147 = vld [vmem:[%s114 + $0x28] sm:$0xff]
        %v148 = vld [vmem:[%s114 + $0x30] sm:$0xff]
        %v149 = vld [vmem:[%s114 + $0x38] sm:$0xff]
        %158 = vrot.lane.b32.xlu0 %v142, 127
        %v159 = vpop.permute.xlu0 %158
        %160 = vrot.lane.b32.xlu0 %v143, 127
        %v161 = vpop.permute.xlu0 %160
        %162 = vrot.lane.b32.xlu0 %v144, 127
        %v163 = vpop.permute.xlu0 %162
        %164 = vrot.lane.b32.xlu0 %v145, 127
        %v165 = vpop.permute.xlu0 %164
        %166 = vrot.lane.b32.xlu0 %v146, 127
        %v167 = vpop.permute.xlu0 %166
        %168 = vrot.lane.b32.xlu0 %v147, 127
        %v169 = vpop.permute.xlu0 %168
        %170 = vrot.lane.b32.xlu0 %v148, 127
        %v171 = vpop.permute.xlu0 %170
        %172 = vrot.lane.b32.xlu0 %v149, 127
        %v173 = vpop.permute.xlu0 %172
        %v182 = vmin.f32 %v142, %v159
        %v183 = vmin.f32 %v143, %v161
        %v184 = vmin.f32 %v144, %v163
        %v185 = vmin.f32 %v145, %v165
        %v186 = vmin.f32 %v146, %v167
        %v187 = vmin.f32 %v147, %v169
        %v188 = vmin.f32 %v148, %v171
        %v189 = vmin.f32 %v149, %v173
        %v190 = vmax.f32 %v142, %v159
        %v191 = vmax.f32 %v143, %v161
        %v192 = vmax.f32 %v144, %v163
        %v193 = vmax.f32 %v145, %v165
        %v194 = vmax.f32 %v146, %v167
        %v195 = vmax.f32 %v147, %v169
        %v196 = vmax.f32 %v148, %v171
        %v197 = vmax.f32 %v149, %v173
        %206 = vrot.lane.b32.xlu0 %v182, 127
        %v207 = vpop.permute.xlu0 %206
        %208 = vrot.lane.b32.xlu0 %v183, 127
        %v209 = vpop.permute.xlu0 %208
        %210 = vrot.lane.b32.xlu0 %v184, 127
        %v211 = vpop.permute.xlu0 %210
        %212 = vrot.lane.b32.xlu0 %v185, 127
        %v213 = vpop.permute.xlu0 %212
        %214 = vrot.lane.b32.xlu0 %v186, 127
        %v215 = vpop.permute.xlu0 %214
        %216 = vrot.lane.b32.xlu0 %v187, 127
        %v217 = vpop.permute.xlu0 %216
        %218 = vrot.lane.b32.xlu0 %v188, 127
        %v219 = vpop.permute.xlu0 %218
        %220 = vrot.lane.b32.xlu0 %v189, 127
        %v221 = vpop.permute.xlu0 %220
        %v230 = vmin.f32 %v142, %v207
        %v231 = vmin.f32 %v143, %v209
        %v232 = vmin.f32 %v144, %v211
        %v233 = vmin.f32 %v145, %v213
        %v234 = vmin.f32 %v146, %v215
        %v235 = vmin.f32 %v147, %v217
        %v236 = vmin.f32 %v148, %v219
        %v237 = vmin.f32 %v149, %v221
        %v238 = vmax.f32 %v142, %v207
        %v239 = vmax.f32 %v143, %v209
        %v240 = vmax.f32 %v144, %v211
        %v241 = vmax.f32 %v145, %v213
        %v242 = vmax.f32 %v146, %v215
        %v243 = vmax.f32 %v147, %v217
        %v244 = vmax.f32 %v148, %v219
        %v245 = vmax.f32 %v149, %v221
        %254 = vrot.lane.b32.xlu0 %v190, 127
        %v255 = vpop.permute.xlu0 %254
        %256 = vrot.lane.b32.xlu0 %v191, 127
        %v257 = vpop.permute.xlu0 %256
        %258 = vrot.lane.b32.xlu0 %v192, 127
        %v259 = vpop.permute.xlu0 %258
        %260 = vrot.lane.b32.xlu0 %v193, 127
        %v261 = vpop.permute.xlu0 %260
        %262 = vrot.lane.b32.xlu0 %v194, 127
        %v263 = vpop.permute.xlu0 %262
        %264 = vrot.lane.b32.xlu0 %v195, 127
        %v265 = vpop.permute.xlu0 %264
        %266 = vrot.lane.b32.xlu0 %v196, 127
        %v267 = vpop.permute.xlu0 %266
        %268 = vrot.lane.b32.xlu0 %v197, 127
        %v269 = vpop.permute.xlu0 %268
        %v278 = vmin.f32 %v238, %v255
        %v279 = vmin.f32 %v239, %v257
        %v280 = vmin.f32 %v240, %v259
        %v281 = vmin.f32 %v241, %v261
        %v282 = vmin.f32 %v242, %v263
        %v283 = vmin.f32 %v243, %v265
        %v284 = vmin.f32 %v244, %v267
        %v285 = vmin.f32 %v245, %v269
        %v286 = vmax.f32 %v238, %v255
        %v287 = vmax.f32 %v239, %v257
        %v288 = vmax.f32 %v240, %v259
        %v289 = vmax.f32 %v241, %v261
        %v290 = vmax.f32 %v242, %v263
        %v291 = vmax.f32 %v243, %v265
        %v292 = vmax.f32 %v244, %v267
        %v293 = vmax.f32 %v245, %v269
        %vm302 = vcmask 1046528
        %v303 = vrot.slane %v230, 1
        %v304 = vrot.slane %v231, 1
        %v305 = vsel %vm302, %v303, %v304
        %v306 = vrot.slane %v232, 1
        %v307 = vrot.slane %v233, 1
        %v308 = vsel %vm302, %v306, %v307
        %v309 = vrot.slane %v234, 1
        %v310 = vrot.slane %v235, 1
        %v311 = vsel %vm302, %v309, %v310
        %v312 = vrot.slane %v236, 1
        %v313 = vrot.slane %v237, 1
        %v314 = vsel %vm302, %v312, %v313
        %v323 = vmax.f32 %v230, %v305
        %v324 = vmax.f32 %v231, %v304
        %v325 = vmax.f32 %v232, %v308
        %v326 = vmax.f32 %v233, %v307
        %v327 = vmax.f32 %v234, %v311
        %v328 = vmax.f32 %v235, %v310
        %v329 = vmax.f32 %v236, %v314
        %v330 = vmax.f32 %v237, %v313
        %v339 = vrot.slane %v286, 1
        %v340 = vrot.slane %v287, 1
        %v341 = vsel %vm302, %v339, %v340
        %v342 = vrot.slane %v288, 1
        %v343 = vrot.slane %v289, 1
        %v344 = vsel %vm302, %v342, %v343
        %v345 = vrot.slane %v290, 1
        %v346 = vrot.slane %v291, 1
        %v347 = vsel %vm302, %v345, %v346
        %v348 = vrot.slane %v292, 1
        %v349 = vrot.slane %v293, 1
        %v350 = vsel %vm302, %v348, %v349
        %v359 = vmin.f32 %v286, %v341
        %v360 = vmin.f32 %v287, %v340
        %v361 = vmin.f32 %v288, %v344
        %v362 = vmin.f32 %v289, %v343
        %v363 = vmin.f32 %v290, %v347
        %v364 = vmin.f32 %v291, %v346
        %v365 = vmin.f32 %v292, %v350
        %v366 = vmin.f32 %v293, %v349
        %v375 = vrot.slane %v278, 1
        %v376 = vrot.slane %v279, 1
        %v377 = vsel %vm302, %v375, %v376
        %v378 = vrot.slane %v280, 1
        %v379 = vrot.slane %v281, 1
        %v380 = vsel %vm302, %v378, %v379
        %v381 = vrot.slane %v282, 1
        %v382 = vrot.slane %v283, 1
        %v383 = vsel %vm302, %v381, %v382
        %v384 = vrot.slane %v284, 1
        %v385 = vrot.slane %v285, 1
        %v386 = vsel %vm302, %v384, %v385
        %v395 = vmin.f32 %v278, %v377
        %v396 = vmin.f32 %v279, %v376
        %v397 = vmin.f32 %v280, %v380
        %v398 = vmin.f32 %v281, %v379
        %v399 = vmin.f32 %v282, %v383
        %v400 = vmin.f32 %v283, %v382
        %v401 = vmin.f32 %v284, %v386
        %v402 = vmin.f32 %v285, %v385
        %v403 = vmax.f32 %v278, %v377
        %v404 = vmax.f32 %v279, %v376
        %v405 = vmax.f32 %v280, %v380
        %v406 = vmax.f32 %v281, %v379
        %v407 = vmax.f32 %v282, %v383
        %v408 = vmax.f32 %v283, %v382
        %v409 = vmax.f32 %v284, %v386
        %v410 = vmax.f32 %v285, %v385
        %vm411 = vcmask 1045504
        %v412 = vrot.slane %v230, 2
        %v413 = vrot.slane %v231, 2
        %v414 = vsel %vm411, %v412, %v413
        %v415 = vrot.slane %v232, 2
        %v416 = vrot.slane %v233, 2
        %v417 = vsel %vm411, %v415, %v416
        %v418 = vrot.slane %v234, 2
        %v419 = vrot.slane %v235, 2
        %v420 = vsel %vm411, %v418, %v419
        %v421 = vrot.slane %v236, 2
        %v422 = vrot.slane %v237, 2
        %v423 = vsel %vm411, %v421, %v422
        %v432 = vmax.f32 %v323, %v414
        %v433 = vmax.f32 %v324, %v413
        %v434 = vmax.f32 %v325, %v417
        %v435 = vmax.f32 %v326, %v416
        %v436 = vmax.f32 %v327, %v420
        %v437 = vmax.f32 %v328, %v419
        %v438 = vmax.f32 %v329, %v423
        %v439 = vmax.f32 %v330, %v422
        %v448 = vrot.slane %v395, 1
        %v449 = vrot.slane %v396, 1
        %v450 = vsel %vm302, %v448, %v449
        %v451 = vrot.slane %v397, 1
        %v452 = vrot.slane %v398, 1
        %v453 = vsel %vm302, %v451, %v452
        %v454 = vrot.slane %v399, 1
        %v455 = vrot.slane %v400, 1
        %v456 = vsel %vm302, %v454, %v455
        %v457 = vrot.slane %v401, 1
        %v458 = vrot.slane %v402, 1
        %v459 = vsel %vm302, %v457, %v458
        %v468 = vmax.f32 %v278, %v450
        %v469 = vmax.f32 %v279, %v449
        %v470 = vmax.f32 %v280, %v453
        %v471 = vmax.f32 %v281, %v452
        %v472 = vmax.f32 %v282, %v456
        %v473 = vmax.f32 %v283, %v455
        %v474 = vmax.f32 %v284, %v459
        %v475 = vmax.f32 %v285, %v458
        %v484 = vrot.slane %v359, 1
        %v485 = vrot.slane %v360, 1
        %v486 = vsel %vm302, %v484, %v485
        %v487 = vrot.slane %v361, 1
        %v488 = vrot.slane %v362, 1
        %v489 = vsel %vm302, %v487, %v488
        %v490 = vrot.slane %v363, 1
        %v491 = vrot.slane %v364, 1
        %v492 = vsel %vm302, %v490, %v491
        %v493 = vrot.slane %v365, 1
        %v494 = vrot.slane %v366, 1
        %v495 = vsel %vm302, %v493, %v494
        %v504 = vmin.f32 %v286, %v486
        %v505 = vmin.f32 %v287, %v485
        %v506 = vmin.f32 %v288, %v489
        %v507 = vmin.f32 %v289, %v488
        %v508 = vmin.f32 %v290, %v492
        %v509 = vmin.f32 %v291, %v491
        %v510 = vmin.f32 %v292, %v495
        %v511 = vmin.f32 %v293, %v494
        %v520 = vrot.slane %v403, 1
        %v521 = vrot.slane %v404, 1
        %v522 = vsel %vm302, %v520, %v521
        %v523 = vrot.slane %v405, 1
        %v524 = vrot.slane %v406, 1
        %v525 = vsel %vm302, %v523, %v524
        %v526 = vrot.slane %v407, 1
        %v527 = vrot.slane %v408, 1
        %v528 = vsel %vm302, %v526, %v527
        %v529 = vrot.slane %v409, 1
        %v530 = vrot.slane %v410, 1
        %v531 = vsel %vm302, %v529, %v530
        %v540 = vmin.f32 %v468, %v522
        %v541 = vmin.f32 %v469, %v521
        %v542 = vmin.f32 %v470, %v525
        %v543 = vmin.f32 %v471, %v524
        %v544 = vmin.f32 %v472, %v528
        %v545 = vmin.f32 %v473, %v527
        %v546 = vmin.f32 %v474, %v531
        %v547 = vmin.f32 %v475, %v530
        %v548 = vmin.f32 %v540, %v504
        %v549 = vmin.f32 %v541, %v505
        %v550 = vmin.f32 %v542, %v506
        %v551 = vmin.f32 %v543, %v507
        %v552 = vmin.f32 %v544, %v508
        %v553 = vmin.f32 %v545, %v509
        %v554 = vmin.f32 %v546, %v510
        %v555 = vmin.f32 %v547, %v511
        %v556 = vmax.f32 %v540, %v504
        %v557 = vmax.f32 %v541, %v505
        %v558 = vmax.f32 %v542, %v506
        %v559 = vmax.f32 %v543, %v507
        %v560 = vmax.f32 %v544, %v508
        %v561 = vmax.f32 %v545, %v509
        %v562 = vmax.f32 %v546, %v510
        %v563 = vmax.f32 %v547, %v511
        %v564 = vmax.f32 %v432, %v548
        %v565 = vmax.f32 %v433, %v549
        %v566 = vmax.f32 %v434, %v550
        %v567 = vmax.f32 %v435, %v551
        %v568 = vmax.f32 %v436, %v552
        %v569 = vmax.f32 %v437, %v553
        %v570 = vmax.f32 %v438, %v554
        %v571 = vmax.f32 %v439, %v555
        %v572 = vmin.f32 %v564, %v556
        %v573 = vmin.f32 %v565, %v557
        %v574 = vmin.f32 %v566, %v558
        %v575 = vmin.f32 %v567, %v559
        %v576 = vmin.f32 %v568, %v560
        %v577 = vmin.f32 %v569, %v561
        %v578 = vmin.f32 %v570, %v562
        %v579 = vmin.f32 %v571, %v563
        %vm580 = vcmask 113664
        %581 = vst.msk [vmem:[%s140] sm:$0xff] %vm580, %v572
        %vm582 = vcmask 111616
        %583 = vst.msk [vmem:[%s140 + $0x8] sm:$0x3f] %vm582, %v573
        %584 = vst.msk [vmem:[%s140 + $0x10] sm:$0xff] %vm580, %v574
        %585 = vst.msk [vmem:[%s140 + $0x18] sm:$0x3f] %vm582, %v575
        %586 = vst.msk [vmem:[%s140 + $0x20] sm:$0xff] %vm580, %v576
        %587 = vst.msk [vmem:[%s140 + $0x28] sm:$0x3f] %vm582, %v577
        %588 = vst.msk [vmem:[%s140 + $0x30] sm:$0xff] %vm580, %v578
        %589 = vst.msk [vmem:[%s140 + $0x38] sm:$0x3f] %vm582, %v579
        %s590 = smul.u32 4, %s15
        %p591 = scmp.lt.s32.totalorder %s590, 7
        %s592 = scalar_select %p591, %s590, 7
        %s593 = smul.addr %s592, 2
        %s594 = smul.addr %s593, 8
        %s595 = scalar_lea.vmem %s1, %s594
        // Predicated region
        $region29: #{tpu_custom_call.1} parent=23 // pred_check
          %p596 = pneg %p59
        $region30: #{tpu_custom_call.1} parent=23 // pred_check_branch
          %598 = sbr.rel (%p596) target = $region32
        $region31: #{tpu_custom_call.1} parent=23 // pred_region
          %s599 = smul.u32 4, %s15
        $region32: #{tpu_custom_call.1} parent=23 // pred_fallthru
          _
      $region24: #{tpu_custom_call.1} parent=5 // pred_fallthru
        _
      %p600 = scmp.le.s32.totalorder 2, %s10
      // Predicated region
      $region33: #{tpu_custom_call.1} parent=5 // pred_check
        %p601 = pneg %p600
      $region34: #{tpu_custom_call.1} parent=5 // pred_check_branch
        %603 = sbr.rel (%p601) target = $region36
      $region35: #{tpu_custom_call.1} parent=5 // pred_region
        %s604 = ssub.s32 %s10, 2
        // Predicated region
        $region37: #{tpu_custom_call.1} parent=35 // pred_check
          %p605 = pneg %p65
        $region38: #{tpu_custom_call.1} parent=35 // pred_check_branch
          %607 = sbr.rel (%p605) target = $region40
        $region39: #{tpu_custom_call.1} parent=35 // pred_region
          %s608 = smul.u32 4, %s16
          %p609 = scmp.lt.s32.totalorder %s608, 7
          %s610 = scalar_select %p609, %s608, 7
          %s611 = smul.addr %s610, 2
          %s612 = smul.addr %s611, 8
          %s613 = scalar_lea.vmem %s1, %s612
        $region40: #{tpu_custom_call.1} parent=35 // pred_fallthru
          _
      $region36: #{tpu_custom_call.1} parent=5 // pred_fallthru
        _
    $region6: #{tpu_custom_call.1} parent=1 // loop_footer
      %s14 = sadd.s32 1, %s10
    $region7: #{tpu_custom_call.1} parent=1 // loop_footer_branch
      %9 = sbr.rel target = $region3
    $region8: #{tpu_custom_call.1} parent=1 // loop_exit
      _
    %614 = vsyncpa [#allocation3], 1
    %s615 = scalar_lea.sflag [#allocation3], 1
    %616 = vsyncpa %s615, 1

</llo_original>
